<compile_context>
chip_gen: v5e
topology: v5e:2x2
jax: 0.10.0
libtpu: 0.0.40
codegen_flags: <defaults>
</compile_context>

<pallas_src>
import functools
import numpy as np
import jax
import jax.numpy as jnp
from jax import lax
from jax.experimental import pallas as pl
from jax.experimental.pallas import tpu as pltpu


def _round_up(x, m):
    return ((x + m - 1) // m) * m


# ======================= fused conv-GEMM kernels (MXU) =======================

def _mm_affine_kernel(a_ref, b_ref, s_ref, t_ref, o_ref, *, relu):
    y = jnp.dot(a_ref[...], b_ref[...], preferred_element_type=jnp.float32)
    y = y * s_ref[...] + t_ref[...]
    if relu:
        y = jnp.maximum(y, 0.0)
    o_ref[...] = y


def _mm_affine_res_kernel(a_ref, b_ref, s_ref, t_ref, r_ref, o_ref, *, relu):
    y = jnp.dot(a_ref[...], b_ref[...], preferred_element_type=jnp.float32)
    y = y * s_ref[...] + t_ref[...] + r_ref[...]
    if relu:
        y = jnp.maximum(y, 0.0)
    o_ref[...] = y


def _bn_stats(y, m):
    """Per-channel batch mean / biased var over the first `m` valid rows."""
    valid = (lax.broadcasted_iota(jnp.int32, (y.shape[0], 1), 0) < m
             ).astype(jnp.float32)
    yv = y * valid
    inv_m = 1.0 / float(m)
    mean = jnp.sum(yv, axis=0, keepdims=True) * inv_m
    var = jnp.maximum(
        jnp.sum(yv * yv, axis=0, keepdims=True) * inv_m - mean * mean, 0.0)
    return mean, var


def _mm_bn_kernel(a_ref, b_ref, g_ref, be_ref, o_ref, *, m, relu, eps):
    y = jnp.dot(a_ref[...], b_ref[...], preferred_element_type=jnp.float32)
    mean, var = _bn_stats(y, m)
    scale = g_ref[...] * lax.rsqrt(var + eps)
    shift = be_ref[...] - scale * mean
    out = y * scale + shift
    if relu:
        out = jnp.maximum(out, 0.0)
    o_ref[...] = out


def _mm_bn_res_kernel(a_ref, b_ref, g_ref, be_ref, r_ref, o_ref, *, m, relu, eps):
    y = jnp.dot(a_ref[...], b_ref[...], preferred_element_type=jnp.float32)
    mean, var = _bn_stats(y, m)
    scale = g_ref[...] * lax.rsqrt(var + eps)
    shift = be_ref[...] - scale * mean
    out = y * scale + shift + r_ref[...]
    if relu:
        out = jnp.maximum(out, 0.0)
    o_ref[...] = out


def _gate(y, t, cg):
    # Matches PyTorch Gated_convolution: ReLU on all 2C channels, chunk,
    # sigmoid(x1) * relu(x2)  (the second relu is a no-op since relu already
    # applied to the whole tensor).
    y = jnp.maximum(y + t, 0.0)
    return jax.nn.sigmoid(y[:, :cg]) * y[:, cg:2 * cg]


def _mm_gate_kernel(a_ref, b_ref, t_ref, o_ref, *, cg):
    y = jnp.dot(a_ref[...], b_ref[...], preferred_element_type=jnp.float32)
    o_ref[...] = _gate(y, t_ref[...], cg)


def _mm_gate_add_kernel(a_ref, b_ref, t_ref, r_ref, o_ref, *, cg):
    y = jnp.dot(a_ref[...], b_ref[...], preferred_element_type=jnp.float32)
    o_ref[...] = _gate(y, t_ref[...], cg) + r_ref[...]


def _mm_gate_muladd_kernel(a_ref, b_ref, t_ref, m_ref, c_ref, o_ref, *, cg):
    y = jnp.dot(a_ref[...], b_ref[...], preferred_element_type=jnp.float32)
    o_ref[...] = _gate(y, t_ref[...], cg) * m_ref[...] + c_ref[...]


# ----------------------------- GEMM wrappers ---------------------------------

def _pad_act(a, Mp, Kp):
    M, K = a.shape
    return jnp.pad(a.astype(jnp.float32),
                   ((0, Mp - M), (0, Kp - K))).astype(jnp.bfloat16)


def _pad_rows_cols(x, Mp, Np):
    M, N = x.shape
    return jnp.pad(x.astype(jnp.float32), ((0, Mp - M), (0, Np - N)))


def _pad_vec(v, Np):
    return jnp.pad(v.astype(jnp.float32), (0, Np - v.shape[0])).reshape(1, Np)


def gemm_affine(a, wp, scale=None, shift=None, relu=False, residual=None):
    """act((a @ W) * scale + shift [+ residual]) with a VMEM-resident weight
    block (constant index_map) and an M-tiled 'parallel' grid."""
    M, K = a.shape
    Kp, Np = wp['mat'].shape
    N = wp['cout']
    Mp = _round_up(M, 16)
    if Mp > 256:
        tm = 256
        Mp = _round_up(Mp, tm)
    else:
        tm = Mp
    a_p = _pad_act(a, Mp, Kp)
    s_p = _pad_vec(scale if scale is not None else jnp.ones((N,), jnp.float32), Np)
    t_p = _pad_vec(shift if shift is not None else jnp.zeros((N,), jnp.float32), Np)
    in_specs = [pl.BlockSpec((tm, Kp), lambda i: (i, 0)),
                pl.BlockSpec((Kp, Np), lambda i: (0, 0)),   # weight resident
                pl.BlockSpec((1, Np), lambda i: (0, 0)),
                pl.BlockSpec((1, Np), lambda i: (0, 0))]
    args = [a_p, wp['mat'], s_p, t_p]
    if residual is not None:
        in_specs.append(pl.BlockSpec((tm, Np), lambda i: (i, 0)))
        args.append(_pad_rows_cols(residual, Mp, Np))
        kernel = functools.partial(_mm_affine_res_kernel, relu=relu)
    else:
        kernel = functools.partial(_mm_affine_kernel, relu=relu)
    out = pl.pallas_call(
        kernel,
        out_shape=jax.ShapeDtypeStruct((Mp, Np), jnp.float32),
        grid_spec=pltpu.PrefetchScalarGridSpec(
            num_scalar_prefetch=0, grid=(Mp // tm,),
            in_specs=in_specs,
            out_specs=pl.BlockSpec((tm, Np), lambda i: (i, 0))),
        compiler_params=pltpu.CompilerParams(
            dimension_semantics=("parallel",)),
    )(*args)
    return out[:M, :N]


def gemm_bn_train(a, wp, bn, relu, residual=None, eps=1e-5):
    """Single-block GEMM with train-mode BatchNorm (batch stats computed inside
    the kernel), optional residual add and ReLU fused into the epilogue.
    TODO(synk): running-stat updates of the PyTorch module are not reproduced
    (forward only)."""
    M, K = a.shape
    Kp, Np = wp['mat'].shape
    Mp = _round_up(M, 16)
    a_p = _pad_act(a, Mp, Kp)
    g_p = _pad_vec(bn['gamma'], Np)
    b_p = _pad_vec(bn['beta'], Np)
    in_specs = [pl.BlockSpec((Mp, Kp), lambda i: (0, 0)),
                pl.BlockSpec((Kp, Np), lambda i: (0, 0)),
                pl.BlockSpec((1, Np), lambda i: (0, 0)),
                pl.BlockSpec((1, Np), lambda i: (0, 0))]
    args = [a_p, wp['mat'], g_p, b_p]
    if residual is not None:
        in_specs.append(pl.BlockSpec((Mp, Np), lambda i: (0, 0)))
        args.append(_pad_rows_cols(residual, Mp, Np))
        kernel = functools.partial(_mm_bn_res_kernel, m=M, relu=relu, eps=eps)
    else:
        kernel = functools.partial(_mm_bn_kernel, m=M, relu=relu, eps=eps)
    out = pl.pallas_call(
        kernel,
        out_shape=jax.ShapeDtypeStruct((Mp, Np), jnp.float32),
        grid_spec=pltpu.PrefetchScalarGridSpec(
            num_scalar_prefetch=0, grid=(1,),
            in_specs=in_specs,
            out_specs=pl.BlockSpec((Mp, Np), lambda i: (0, 0))),
        compiler_params=pltpu.CompilerParams(
            dimension_semantics=("arbitrary",)),
    )(*args)
    return out[:M, :wp['cout']]


def gemm_gate(a, wp, bias, post=None):
    """Gated-convolution GEMM: bias + ReLU + sigmoid(y1)*y2 fused in-kernel.
    post = ('add', r)      -> output + r           (rgb fusion add)
    post = ('muladd', m, c)-> output * m + c       (top-level mul/add)
    # TODO(synk): 64-wide output uses masked stores; acceptable at this size."""
    M, K = a.shape
    Kp, Np = wp['mat'].shape
    cg = wp['cout'] // 2
    Mp = _round_up(M, 16)
    a_p = _pad_act(a, Mp, Kp)
    t_p = _pad_vec(bias, Np)
    in_specs = [pl.BlockSpec((Mp, Kp), lambda i: (0, 0)),
                pl.BlockSpec((Kp, Np), lambda i: (0, 0)),
                pl.BlockSpec((1, Np), lambda i: (0, 0))]
    args = [a_p, wp['mat'], t_p]
    if post is None:
        kernel = functools.partial(_mm_gate_kernel, cg=cg)
    else:
        extra = [jnp.pad(e.astype(jnp.float32), ((0, Mp - M), (0, 0)))
                 for e in post[1:]]
        in_specs += [pl.BlockSpec((Mp, cg), lambda i: (0, 0))] * len(extra)
        args += extra
        kernel = functools.partial(
            _mm_gate_add_kernel if post[0] == 'add' else _mm_gate_muladd_kernel,
            cg=cg)
    out = pl.pallas_call(
        kernel,
        out_shape=jax.ShapeDtypeStruct((Mp, cg), jnp.float32),
        grid_spec=pltpu.PrefetchScalarGridSpec(
            num_scalar_prefetch=0, grid=(1,),
            in_specs=in_specs,
            out_specs=pl.BlockSpec((Mp, cg), lambda i: (0, 0))),
        compiler_params=pltpu.CompilerParams(
            dimension_semantics=("arbitrary",)),
    )(*args)
    return out[:M]


# ------------------------------- im2col glue ---------------------------------

def _im2col(x_nhwc, kh, kw, stride, pad):
    # TODO(synk): patch matrix is materialized by XLA; streaming the kh*kw taps
    # through shifted BlockSpecs would remove the read amplification.
    N, H, W, C = x_nhwc.shape
    xp = jnp.pad(x_nhwc, ((0, 0), (pad, pad), (pad, pad), (0, 0)))
    Ho = (H + 2 * pad - kh) // stride + 1
    Wo = (W + 2 * pad - kw) // stride + 1
    cols = []
    for dy in range(kh):
        for dx in range(kw):
            cols.append(xp[:, dy:dy + (Ho - 1) * stride + 1:stride,
                           dx:dx + (Wo - 1) * stride + 1:stride, :])
    pmat = jnp.concatenate(cols, axis=-1).reshape(N * Ho * Wo, kh * kw * C)
    return pmat, Ho, Wo


def conv_affine(x_nhwc, wp, stride, pad, scale=None, shift=None, relu=False,
                residual=None):
    pmat, Ho, Wo = _im2col(x_nhwc, wp['kh'], wp['kw'], stride, pad)
    return gemm_affine(pmat, wp, scale, shift, relu, residual), Ho, Wo


def conv_bn_train(x_nhwc, wp, stride, pad, bn, relu, residual=None):
    pmat, Ho, Wo = _im2col(x_nhwc, wp['kh'], wp['kw'], stride, pad)
    return gemm_bn_train(pmat, wp, bn, relu, residual), Ho, Wo


def conv_gate(x_nhwc, gp, post=None):
    pmat, Ho, Wo = _im2col(x_nhwc, gp['w']['kh'], gp['w']['kw'], 1, 1)
    return gemm_gate(pmat, gp['w'], gp['b'], post), Ho, Wo


# ----------------------------- BatchNorm / pooling ---------------------------

def bn_eval_affine(bn, eps=1e-5):
    s = bn['gamma'] * lax.rsqrt(bn['rv'] + eps)
    return s, bn['beta'] - s * bn['rm']


def maxpool_3x3_s2_p1_nhwc(x):
    # TODO(synk): 3x3/stride-2 max-pool kept as plain-JAX lax.reduce_window.
    return lax.reduce_window(x, -jnp.inf, lax.max,
                             (1, 3, 3, 1), (1, 2, 2, 1),
                             [(0, 0), (1, 1), (1, 1), (0, 0)])


# -------------------- Residual_feature + wavelet add (fused) -----------------

_FILT1 = np.array([[0, 0, 0, 0, 0], [0, -1, 2, -1, 0], [0, 2, 4, 2, 0],
                   [0, -1, 2, -1, 0], [0, 0, 0, 0, 0]], np.float32)
_FILT2 = np.array([[-1, 2, -2, 2, -1], [2, -6, 8, -6, 2], [-2, 8, -12, 8, -2],
                   [2, -6, 8, -6, 2], [-1, 2, -2, 2, -1]], np.float32)
_FILT3 = np.array([[0, 0, 0, 0, 0], [0, 0, 0, 0, 0], [0, 1, -2, 1, 0],
                   [0, 0, 0, 0, 0], [0, 0, 0, 0, 0]], np.float32)


def _taps(filt):
    return tuple((dy, dx, float(filt[dy, dx]))
                 for dy in range(5) for dx in range(5)
                 if float(filt[dy, dx]) != 0.0)


_TAPS1, _TAPS2, _TAPS3 = _taps(_FILT1), _taps(_FILT2), _taps(_FILT3)


def _residual_wav_kernel(xb_ref, wav_ref, mask_ref, o_ref, buf_ref, *, L, G, Wp):
    """Three stacked 5x5 depthwise convs on a lane-dense flattened layout.
    xb_ref : (tb, L+2G)  zero-padded image, flat, with G-wide zero guard bands.
    wav_ref: (tb, L)     wavelet feature (padded-flat layout, zero borders).
    mask   : (1, L)      interior mask (re-applies the zero 2-pixel border)."""
    @pl.when(pl.program_id(0) == 0)
    def _():
        # Only the guard bands / borders are ever read un-written: zero once.
        buf_ref[...] = jnp.zeros(buf_ref.shape, buf_ref.dtype)

    mask = mask_ref[...]

    def dwconv(src_ref, taps):
        acc = None
        for dy, dx, c in taps:
            off = G + (dy - 2) * Wp + (dx - 2)
            v = c * src_ref[:, off:off + L]
            acc = v if acc is None else acc + v
        return acc

    buf_ref[:, G:G + L] = dwconv(xb_ref, _TAPS1) * mask      # edge features
    buf_ref[:, G:G + L] = dwconv(buf_ref, _TAPS2) * mask     # texture features
    o_ref[...] = dwconv(buf_ref, _TAPS3) + wav_ref[...]      # residual + wavelet


def composite_feature_fused(x_nchw):
    """composite_feature_extractor: wavelet branch + residual branch, with the
    final add fused into the residual kernel's epilogue."""
    N, C, H, W = x_nchw.shape
    wav = wavelet_domain_feature_fwd(x_nchw)                 # (N,C,H,W) f32
    Hp, Wp = H + 4, W + 4
    L, G = Hp * Wp, 2 * Wp + 2
    B = N * C
    tb = 8
    Bp = _round_up(B, tb)

    xpad = jnp.pad(x_nchw.astype(jnp.float32).reshape(B, H, W),
                   ((0, Bp - B), (2, 2), (2, 2))).reshape(Bp, L)
    xbuf = jnp.pad(xpad, ((0, 0), (G, G)))                   # guard bands
    wavp = jnp.pad(wav.astype(jnp.float32).reshape(B, H, W),
                   ((0, Bp - B), (2, 2), (2, 2))).reshape(Bp, L)

    ii, jj = np.arange(L) // Wp, np.arange(L) % Wp
    interior = (ii >= 2) & (ii < Hp - 2) & (jj >= 2) & (jj < Wp - 2)
    mask = jnp.asarray(interior.astype(np.float32).reshape(1, L))

    out = pl.pallas_call(
        functools.partial(_residual_wav_kernel, L=L, G=G, Wp=Wp),
        out_shape=jax.ShapeDtypeStruct((Bp, L), jnp.float32),
        grid_spec=pltpu.PrefetchScalarGridSpec(
            num_scalar_prefetch=0, grid=(Bp // tb,),
            in_specs=[pl.BlockSpec((tb, L + 2 * G), lambda i: (i, 0)),
                      pl.BlockSpec((tb, L), lambda i: (i, 0)),
                      pl.BlockSpec((1, L), lambda i: (0, 0))],
            out_specs=pl.BlockSpec((tb, L), lambda i: (i, 0)),
            scratch_shapes=[pltpu.VMEM((tb, L + 2 * G), jnp.float32)]),
        compiler_params=pltpu.CompilerParams(
            dimension_semantics=("arbitrary",)),
    )(xbuf, wavp, mask)
    comp = out.reshape(Bp, Hp, Wp)[:B, 2:2 + H, 2:2 + W]
    return comp.reshape(N, C, H, W)


# ---------------------------- WaveletDomainFeature ---------------------------

_DB4_H = np.array([0.23037781330885523, 0.7148465705525415, 0.6308807679295904,
                   -0.02798376941698385, -0.18703481171888114,
                   0.030841381835986965, 0.032883011666982945,
                   -0.010597401784997278], np.float64)
_DEC_LO = np.asarray(_DB4_H[::-1], np.float32)
_DEC_HI = np.asarray(-((-1.0) ** np.arange(8)) * _DB4_H, np.float32)


def _dwt1d_last(x, filt):
    """Single-level DWT along last axis, symmetric extension.
    TODO(synk): pywt 'symmetric' boundary convention approximated in plain JAX."""
    F = len(filt)
    n = x.shape[-1]
    left = x[..., F - 2::-1]
    right = x[..., :n - F:-1]
    ext = jnp.concatenate([left, x, right], axis=-1)
    nout = (n + F - 1) // 2
    acc = jnp.zeros(x.shape[:-1] + (nout,), jnp.float32)
    for j in range(F):
        start = F - j
        acc = acc + float(filt[j]) * ext[..., start:start + 2 * nout - 1:2]
    return acc


def _dwt1d_axis2(x, filt):
    return jnp.swapaxes(_dwt1d_last(jnp.swapaxes(x, -1, -2), filt), -1, -2)


def _abs3sum_kernel(a_ref, b_ref, c_ref, o_ref):
    o_ref[...] = jnp.abs(a_ref[...]) + jnp.abs(b_ref[...]) + jnp.abs(c_ref[...])


def _abs3sum(a, b, c):
    """|a|+|b|+|c| on lane-dense (rows, 128) slabs, 512-row tiles."""
    shape = a.shape
    L = int(np.prod(shape))
    R = -(-L // 128)
    tr = min(512, _round_up(R, 8))
    Rp = _round_up(R, tr)
    Lp = Rp * 128
    flats = [jnp.pad(t.reshape(-1).astype(jnp.float32), (0, Lp - L)).reshape(Rp, 128)
             for t in (a, b, c)]
    out = pl.pallas_call(
        _abs3sum_kernel,
        out_shape=jax.ShapeDtypeStruct((Rp, 128), jnp.float32),
        grid_spec=pltpu.PrefetchScalarGridSpec(
            num_scalar_prefetch=0, grid=(Rp // tr,),
            in_specs=[pl.BlockSpec((tr, 128), lambda i: (i, 0))] * 3,
            out_specs=pl.BlockSpec((tr, 128), lambda i: (i, 0))),
        compiler_params=pltpu.CompilerParams(dimension_semantics=("parallel",)),
    )(*flats)
    return out.reshape(-1)[:L].reshape(shape)


def wavelet_domain_feature_fwd(x_nchw):
    # TODO(synk): bilinear resize (align_corners=False) kept as jax.image.resize.
    N, C, H, W = x_nchw.shape
    lo = _dwt1d_last(x_nchw, _DEC_LO)
    hi = _dwt1d_last(x_nchw, _DEC_HI)
    LH = _dwt1d_axis2(lo, _DEC_HI)
    HL = _dwt1d_axis2(hi, _DEC_LO)
    HH = _dwt1d_axis2(hi, _DEC_HI)
    freq = _abs3sum(LH, HL, HH)
    return jax.image.resize(freq, (N, C, H, W), method='bilinear')


# ------------------------------- sub-modules ---------------------------------

def gcff_fwd(comp_nhwc, p, post=None):
    """gated_composite_feature_fusion conv path (train-mode BN, fused in-kernel)
    plus the gated conv (gate + optional downstream add/mul-add fused)."""
    N = comp_nhwc.shape[0]
    rows, Ho, Wo = conv_bn_train(comp_nhwc, p['c1'], 2, 1, p['bn1'], relu=True)
    x = rows.reshape(N, Ho, Wo, -1)
    logit_rows, Ho, Wo = conv_bn_train(x, p['c2'], 2, 1, p['bn2'], relu=True)
    logit = logit_rows.reshape(N, Ho, Wo, -1)
    gated_rows, _, _ = conv_gate(logit, p['gated'], post=post)
    return gated_rows, logit_rows, (N, Ho, Wo)


def basic_block_eval(x_nhwc, bp, stride):
    """Eval-mode BN fused into the conv GEMM epilogue; residual add + final ReLU
    fused into the second conv's epilogue."""
    N, H, W, C = x_nhwc.shape
    s1, t1 = bn_eval_affine(bp['bn1'])
    rows, Ho, Wo = conv_affine(x_nhwc, bp['conv1'], stride, 1,
                               scale=s1, shift=t1, relu=True)
    h = rows.reshape(N, Ho, Wo, -1)
    if 'down' in bp:
        sd, td = bn_eval_affine(bp['down_bn'])
        idn, _, _ = conv_affine(x_nhwc, bp['down'], stride, 0, scale=sd, shift=td)
    else:
        idn = x_nhwc.reshape(-1, C)
    s2, t2 = bn_eval_affine(bp['bn2'])
    rows, Ho, Wo = conv_affine(h, bp['conv2'], 1, 1, scale=s2, shift=t2,
                               relu=True, residual=idn)
    return rows.reshape(N, Ho, Wo, -1)


def rgb_feature_fwd(x_nhwc, p):
    """resnet34 children[:-5] in eval mode: conv1, bn1, relu, maxpool, layer1."""
    N = x_nhwc.shape[0]
    s, t = bn_eval_affine(p['bn1'])
    rows, Ho, Wo = conv_affine(x_nhwc, p['conv1'], 2, 3, scale=s, shift=t, relu=True)
    y = maxpool_3x3_s2_p1_nhwc(rows.reshape(N, Ho, Wo, -1))
    for bp, stride in p['layers'][0]:
        y = basic_block_eval(y, bp, stride)
    return y


def basic_block_train(x_nhwc, bp, stride):
    """Train-mode BN computed inside the GEMM kernel; residual + ReLU fused."""
    N, H, W, C = x_nhwc.shape
    rows, Ho, Wo = conv_bn_train(x_nhwc, bp['conv1'], stride, 1, bp['bn1'], relu=True)
    h = rows.reshape(N, Ho, Wo, -1)
    if 'down' in bp:
        idn, _, _ = conv_bn_train(x_nhwc, bp['down'], stride, 0, bp['down_bn'],
                                  relu=False)
    else:
        idn = x_nhwc.reshape(-1, C)
    rows, Ho, Wo = conv_bn_train(h, bp['conv2'], 1, 1, bp['bn2'], relu=True,
                                 residual=idn)
    return rows.reshape(N, Ho, Wo, -1)


def resnet34_train_fwd(x_nhwc, p):
    N = x_nhwc.shape[0]
    rows, Ho, Wo = conv_bn_train(x_nhwc, p['conv1'], 2, 3, p['bn1'], relu=True)
    y = maxpool_3x3_s2_p1_nhwc(rows.reshape(N, Ho, Wo, -1))
    for blocks in p['layers']:
        for bp, stride in blocks:
            y = basic_block_train(y, bp, stride)
    feat = jnp.mean(y, axis=(1, 2))            # adaptive avg-pool to 1x1 (glue)
    return gemm_affine(feat, p['fc'], shift=p['fc_b'])


def channel_reducer_fwd(x_nhwc, p):
    N = x_nhwc.shape[0]
    rows, Ho, Wo = conv_bn_train(x_nhwc, p['c1'], 1, 1, p['bn1'], relu=True)
    x = rows.reshape(N, Ho, Wo, -1)
    rows, Ho, Wo = conv_bn_train(x, p['c2'], 1, 1, p['bn2'], relu=True)
    x = rows.reshape(N, Ho, Wo, -1)
    rows, Ho, Wo = conv_bn_train(x, p['c3'], 1, 0, p['bn3'], relu=False)
    return rows.reshape(N, Ho, Wo, -1)


def adaptive_feature_fusion_fwd(x_nchw, p):
    x_nhwc = jnp.transpose(x_nchw, (0, 2, 3, 1))
    # composite extractor is parameter-free & deterministic: compute once, reuse.
    comp_nhwc = jnp.transpose(composite_feature_fused(x_nchw), (0, 2, 3, 1))

    # top-level gated_composite_feature_fusion
    comp_gated, conv_comp, (N, Ho, Wo) = gcff_fwd(comp_nhwc, p['gcff'])

    # adaptive_feature_map: rgb + gated_comp add fused into the gcff gate
    # epilogue; the top-level mul/add fused into the afm gate epilogue.
    rgb = rgb_feature_fwd(x_nhwc, p['afm']['rgb'])
    rgb_rows = rgb.reshape(-1, rgb.shape[-1])
    afm_rows, _, _ = gcff_fwd(comp_nhwc, p['afm']['gcff'], post=('add', rgb_rows))
    fusion_in = afm_rows.reshape(N, Ho, Wo, -1)
    fused_rows, Ho2, Wo2 = conv_gate(fusion_in, p['afm']['gated'],
                                     post=('muladd', comp_gated, conv_comp))
    fusion = fused_rows.reshape(N, Ho2, Wo2, -1)

    fusion = channel_reducer_fwd(fusion, p['cr'])
    return resnet34_train_fwd(fusion, p['backbone'])


# ------------------------------ parameters ------------------------------------
# TODO(synk): pretrained ResNet-34 weights replaced by deterministic random init.

def build_params(key):
    keys = iter(jax.random.split(key, 4096))
    nk = lambda: next(keys)

    def conv_pack(cout, cin, k):
        w = 0.05 * jax.random.normal(nk(), (cout, cin, k, k), jnp.float32)
        K = k * k * cin
        Kp, Np = _round_up(K, 128), _round_up(cout, 128)
        wmat = jnp.transpose(w, (2, 3, 1, 0)).reshape(K, cout)
        wmat = jnp.pad(wmat, ((0, Kp - K), (0, Np - cout))).astype(jnp.bfloat16)
        return {'mat': wmat, 'kh': k, 'kw': k, 'K': K, 'cout': cout}

    def bias(c):
        return 0.01 * jax.random.normal(nk(), (c,), jnp.float32)

    def make_bn(c):
        return {'gamma': jnp.ones((c,), jnp.float32),
                'beta': jnp.zeros((c,), jnp.float32),
                'rm': 0.01 * jax.random.normal(nk(), (c,), jnp.float32),
                'rv': 1.0 + 0.1 * jax.random.uniform(nk(), (c,), jnp.float32)}

    def make_basic_block(cin, cout, stride):
        bp = {'conv1': conv_pack(cout, cin, 3), 'bn1': make_bn(cout),
              'conv2': conv_pack(cout, cout, 3), 'bn2': make_bn(cout)}
        if stride != 1 or cin != cout:
            bp['down'] = conv_pack(cout, cin, 1)
            bp['down_bn'] = make_bn(cout)
        return bp

    def make_resnet34(num_classes, trunk_only=False):
        rp = {'conv1': conv_pack(64, 3, 7), 'bn1': make_bn(64)}
        cfg = [(64, 3, 1), (128, 4, 2), (256, 6, 2), (512, 3, 2)]
        if trunk_only:
            cfg = cfg[:1]
        cin, layers = 64, []
        for cout, nblk, stride in cfg:
            blocks = []
            for bidx in range(nblk):
                s = stride if bidx == 0 else 1
                blocks.append((make_basic_block(cin, cout, s), s))
                cin = cout
            layers.append(blocks)
        rp['layers'] = layers
        if not trunk_only:
            fc_w = 0.05 * jax.random.normal(nk(), (num_classes, 512), jnp.float32)
            Np = _round_up(num_classes, 128)
            rp['fc'] = {'mat': jnp.pad(fc_w.T, ((0, 0), (0, Np - num_classes))
                                       ).astype(jnp.bfloat16),
                        'K': 512, 'cout': num_classes}
            rp['fc_b'] = jnp.zeros((num_classes,), jnp.float32)
        return rp

    def make_gated(in_ch):
        return {'w': conv_pack(2 * in_ch, in_ch, 3), 'b': bias(2 * in_ch)}

    def make_gcff(in_ch, out_ch):
        return {'c1': conv_pack(out_ch // 2, in_ch, 3), 'bn1': make_bn(out_ch // 2),
                'c2': conv_pack(out_ch, out_ch // 2, 3), 'bn2': make_bn(out_ch),
                'gated': make_gated(out_ch)}

    in_ch, out_ch = 3, 64
    return {
        'afm': {'gcff': make_gcff(in_ch, out_ch),
                'rgb': make_resnet34(2, trunk_only=True),
                'gated': make_gated(out_ch)},
        'gcff': make_gcff(in_ch, out_ch),
        'cr': {'c1': conv_pack(32, 64, 3), 'bn1': make_bn(32),
               'c2': conv_pack(32, 32, 3), 'bn2': make_bn(32),
               'c3': conv_pack(3, 32, 1), 'bn3': make_bn(3)},
        'backbone': make_resnet34(2),
    }


# ---------------------------------- main --------------------------------------

if __name__ == "__main__":
    root = jax.random.PRNGKey(0)
    pkey, xkey = jax.random.split(root)
    params = build_params(pkey)
    x = jax.random.normal(xkey, (2, 3, 32, 32), jnp.float32)   # NCHW input
    out = adaptive_feature_fusion_fwd(x, params)
    out = jax.block_until_ready(out)
    assert out.shape == (2, 2), out.shape
    assert bool(jnp.all(jnp.isfinite(out)))
    print("KERNEL_OK")
</pallas_src>

<mosaic_0001>
module attributes {stable_mosaic.version = 11 : i64} {
  func.func @_abs3sum_kernel(%arg0: i32, %arg1: memref<24x128xf32, #tpu.memory_space<vmem>>, %arg2: memref<24x128xf32, #tpu.memory_space<vmem>>, %arg3: memref<24x128xf32, #tpu.memory_space<vmem>>, %arg4: memref<24x128xf32, #tpu.memory_space<vmem>>) attributes {dimension_semantics = [#tpu.dimension_semantics<parallel>], iteration_bounds = array<i64: 1>, scalar_prefetch = 0 : i64, scratch_operands = 0 : i64, tpu.core_type = #tpu.core_type<tc>, window_params = [{transform_indices = @transform_0, window_bounds = array<i64: 24, 128>}, {transform_indices = @transform_1, window_bounds = array<i64: 24, 128>}, {transform_indices = @transform_2, window_bounds = array<i64: 24, 128>}, {transform_indices = @transform_3, window_bounds = array<i64: 24, 128>}]} {
    %c0 = arith.constant 0 : index
    %c0_0 = arith.constant 0 : index
    %0 = vector.load %arg1[%c0, %c0_0] : memref<24x128xf32, #tpu.memory_space<vmem>>, vector<24x128xf32>
    %1 = math.absf %0 : vector<24x128xf32>
    %c0_1 = arith.constant 0 : index
    %c0_2 = arith.constant 0 : index
    %2 = vector.load %arg2[%c0_1, %c0_2] : memref<24x128xf32, #tpu.memory_space<vmem>>, vector<24x128xf32>
    %3 = math.absf %2 : vector<24x128xf32>
    %4 = arith.addf %1, %3 : vector<24x128xf32>
    %c0_3 = arith.constant 0 : index
    %c0_4 = arith.constant 0 : index
    %5 = vector.load %arg3[%c0_3, %c0_4] : memref<24x128xf32, #tpu.memory_space<vmem>>, vector<24x128xf32>
    %6 = math.absf %5 : vector<24x128xf32>
    %7 = arith.addf %4, %6 : vector<24x128xf32>
    %c0_5 = arith.constant 0 : index
    %c0_6 = arith.constant 0 : index
    %8 = vector.load %arg4[%c0_5, %c0_6] : memref<24x128xf32, #tpu.memory_space<vmem>>, vector<24x128xf32>
    tpu.vector_store %arg4[%c0_5, %c0_6], %7 {strides = array<i32>} : memref<24x128xf32, #tpu.memory_space<vmem>>, vector<24x128xf32>,
    return
  }
  func.func @transform_0(%arg0: i32) -> (i32, i32) {
    %c0_i32 = arith.constant 0 : i32
    %c0_i32_0 = arith.constant 0 : i32
    return %arg0, %c0_i32 : i32, i32
  }
  func.func @transform_1(%arg0: i32) -> (i32, i32) {
    %c0_i32 = arith.constant 0 : i32
    %c0_i32_0 = arith.constant 0 : i32
    return %arg0, %c0_i32 : i32, i32
  }
  func.func @transform_2(%arg0: i32) -> (i32, i32) {
    %c0_i32 = arith.constant 0 : i32
    %c0_i32_0 = arith.constant 0 : i32
    return %arg0, %c0_i32 : i32, i32
  }
  func.func @transform_3(%arg0: i32) -> (i32, i32) {
    %c0_i32 = arith.constant 0 : i32
    %c0_i32_0 = arith.constant 0 : i32
    return %arg0, %c0_i32 : i32, i32
  }
}

</mosaic_0001>

<llo_original>
// kernel: tpu_custom_call.1
$region0: #{tpu_custom_call.1}
  #allocation0 [shape = 'u32[]', space=smem, size = 0x4, offset = 0x4, fixed_abs, tag = 'smem constant byte address 0x4 - core index']
  #allocation1 [shape = 'u32[72,128]{1,0:T(1,128)}', space=vmem, size = 0x9000, scoped, tag = 'internal scratch']
  %s0 = inlined_call_operand.hbm [shape: f32[24,128], index: 0, kind: input, shape index: {}]
  %s1 = inlined_call_operand.hbm [shape: f32[24,128], index: 1, kind: input, shape index: {}]
  %s2 = inlined_call_operand.hbm [shape: f32[24,128], index: 2, kind: input, shape index: {}]
  %s3 = inlined_call_operand.hbm [shape: f32[24,128], index: 3, kind: output, shape index: {}]
  %s4 = sld [smem:[#allocation0]]
  $region34: #{tpu_custom_call.1} parent=0
    _
  %s6 = ssub.s32 1, %s4
  %s7 = scalar_select 0, %s6, %s4
  $region1: #{tpu_custom_call.1} parent=0
    #allocation2 [shape = 'u8[12288]{0}', space=vmem, size = 0x3000, scoped, tag = 'input window, operand 0, single buffered']
    #allocation3 [shape = 's32[1]{0}', space=sflag, size = 0x4, scoped, tag = 'scoped memory for tpu_custom_call.1']
    #allocation4 [shape = 's32[1]{0}', space=sflag, size = 0x4, scoped, tag = 'scoped memory for tpu_custom_call.1']
    #allocation5 [shape = 'u8[12288]{0}', space=vmem, size = 0x3000, scoped, tag = 'input window, operand 1, single buffered']
    #allocation6 [shape = 's32[1]{0}', space=sflag, size = 0x4, scoped, tag = 'scoped memory for tpu_custom_call.1']
    #allocation7 [shape = 'u8[12288]{0}', space=vmem, size = 0x3000, scoped, tag = 'input window, operand 2, single buffered']
    #allocation8 [shape = 'u8[12288]{0}', space=vmem, size = 0x3000, scoped, tag = 'output window, operand 0, single buffered']
    %8 = vsyncpa [#allocation3], 0
    %9 = vsyncpa [#allocation6], 0
    %10 = vsyncpa [#allocation4], 0
    // Predicated region
    $region2: #{tpu_custom_call.1} parent=1 // pred_check
      _
    $region3: #{tpu_custom_call.1} parent=1 // pred_check_branch
      %12 = sbr.rel (0) target = $region5
    $region4: #{tpu_custom_call.1} parent=1 // pred_region
      %14 = vsyncadd [#allocation3], 0
      %s15 = sshll.u32 %s0, 4
      %s16 = int_to_ptr.hbm [resolvable:$true] %s15
      %s17 = sshll.u32 [#allocation2], 4
      %s18 = int_to_ptr.vmem [resolvable:$true] %s17
      %23 = dma.hbm_to_vmem [thread:$0]  %s16, 384, %s18, [#allocation3], 128, 128, 8
    $region5: #{tpu_custom_call.1} parent=1 // pred_fallthru
      _
    // Predicated region
    $region6: #{tpu_custom_call.1} parent=1 // pred_check
      _
    $region7: #{tpu_custom_call.1} parent=1 // pred_check_branch
      %25 = sbr.rel (0) target = $region9
    $region8: #{tpu_custom_call.1} parent=1 // pred_region
      %27 = vsyncadd [#allocation6], 0
      %s28 = sshll.u32 %s1, 4
      %s29 = int_to_ptr.hbm [resolvable:$true] %s28
      %s30 = sshll.u32 [#allocation5], 4
      %s31 = int_to_ptr.vmem [resolvable:$true] %s30
      %36 = dma.hbm_to_vmem [thread:$0]  %s29, 384, %s31, [#allocation6], 128, 128, 8
    $region9: #{tpu_custom_call.1} parent=1 // pred_fallthru
      _
    // Predicated region
    $region10: #{tpu_custom_call.1} parent=1 // pred_check
      _
    $region11: #{tpu_custom_call.1} parent=1 // pred_check_branch
      %38 = sbr.rel (0) target = $region13
    $region12: #{tpu_custom_call.1} parent=1 // pred_region
      %40 = vsyncadd [#allocation6], 0
      %s41 = sshll.u32 %s2, 4
      %s42 = int_to_ptr.hbm [resolvable:$true] %s41
      %s43 = sshll.u32 [#allocation7], 4
      %s44 = int_to_ptr.vmem [resolvable:$true] %s43
      %49 = dma.hbm_to_vmem [thread:$0]  %s42, 384, %s44, [#allocation6], 128, 128, 8
    $region13: #{tpu_custom_call.1} parent=1 // pred_fallthru
      _
    // Predicated region
    $region14: #{tpu_custom_call.1} parent=1 // pred_check
      _
    $region15: #{tpu_custom_call.1} parent=1 // pred_check_branch
      %51 = sbr.rel (0) target = $region17
    $region16: #{tpu_custom_call.1} parent=1 // pred_region
      %53 = dma.done [#allocation3], 384
    $region17: #{tpu_custom_call.1} parent=1 // pred_fallthru
      _
    // Predicated region
    $region18: #{tpu_custom_call.1} parent=1 // pred_check
      _
    $region19: #{tpu_custom_call.1} parent=1 // pred_check_branch
      %55 = sbr.rel (0) target = $region21
    $region20: #{tpu_custom_call.1} parent=1 // pred_region
      %57 = dma.done [#allocation6], 384
    $region21: #{tpu_custom_call.1} parent=1 // pred_fallthru
      _
    // Predicated region
    $region22: #{tpu_custom_call.1} parent=1 // pred_check
      _
    $region23: #{tpu_custom_call.1} parent=1 // pred_check_branch
      %59 = sbr.rel (0) target = $region25
    $region24: #{tpu_custom_call.1} parent=1 // pred_region
      %61 = dma.done [#allocation6], 384
    $region25: #{tpu_custom_call.1} parent=1 // pred_fallthru
      _
    %v62 = vld [vmem:[#allocation2] sm:$0xff]
    %v63 = vld [vmem:[#allocation2 + $0x8] sm:$0xff]
    %v64 = vld [vmem:[#allocation2 + $0x10] sm:$0xff]
    %v65 = vand.u32 2147483647, %v62
    %v66 = vand.u32 2147483647, %v63
    %v67 = vand.u32 2147483647, %v64
    %v68 = vld [vmem:[#allocation5] sm:$0xff]
    %v69 = vld [vmem:[#allocation5 + $0x8] sm:$0xff]
    %v70 = vld [vmem:[#allocation5 + $0x10] sm:$0xff]
    %v71 = vand.u32 2147483647, %v68
    %v72 = vand.u32 2147483647, %v69
    %v73 = vand.u32 2147483647, %v70
    %v74 = vadd.f32 %v65, %v71
    %v75 = vadd.f32 %v66, %v72
    %v76 = vadd.f32 %v67, %v73
    %v77 = vld [vmem:[#allocation7] sm:$0xff]
    %v78 = vld [vmem:[#allocation7 + $0x8] sm:$0xff]
    %v79 = vld [vmem:[#allocation7 + $0x10] sm:$0xff]
    %v80 = vand.u32 2147483647, %v77
    %v81 = vand.u32 2147483647, %v78
    %v82 = vand.u32 2147483647, %v79
    %v83 = vadd.f32 %v74, %v80
    %v84 = vadd.f32 %v75, %v81
    %v85 = vadd.f32 %v76, %v82
    %86 = vst [vmem:[#allocation8] sm:$0xff] %v83
    %87 = vst [vmem:[#allocation8 + $0x8] sm:$0xff] %v84
    %88 = vst [vmem:[#allocation8 + $0x10] sm:$0xff] %v85
    // Predicated region
    $region26: #{tpu_custom_call.1} parent=1 // pred_check
      _
    $region27: #{tpu_custom_call.1} parent=1 // pred_check_branch
      %90 = sbr.rel (0) target = $region29
    $region28: #{tpu_custom_call.1} parent=1 // pred_region
      %92 = vsyncadd [#allocation4], 0
      %s93 = sshll.u32 [#allocation8], 4
      %s94 = int_to_ptr.vmem [resolvable:$true] %s93
      %s95 = sshll.u32 %s3, 4
      %s96 = int_to_ptr.hbm [resolvable:$true] %s95
      %101 = dma.vmem_to_hbm [thread:$0]  %s94, 384, %s96, [#allocation4], 128, 128, 8
    $region29: #{tpu_custom_call.1} parent=1 // pred_fallthru
      _
    // Predicated region
    $region30: #{tpu_custom_call.1} parent=1 // pred_check
      _
    $region31: #{tpu_custom_call.1} parent=1 // pred_check_branch
      %103 = sbr.rel (0) target = $region33
    $region32: #{tpu_custom_call.1} parent=1 // pred_region
      %105 = dma.done [#allocation4], 384
    $region33: #{tpu_custom_call.1} parent=1 // pred_fallthru
      _
    %106 = vsyncpa [#allocation3], 1
    %107 = vsyncpa [#allocation6], 1
    %108 = vsyncpa [#allocation4], 1

</llo_original>
